<compile_context>
chip_gen: v7x
topology: tpu7x:2x2x1
jax: 0.10.0
libtpu: 0.0.40
codegen_flags: <defaults>
</compile_context>

<pallas_src>
import functools

import jax
import jax.numpy as jnp
import numpy as np
from jax.experimental import pallas as pl
from jax.experimental.pallas import tpu as pltpu


# ------------------------------ Pallas kernel -------------------------------

def _rmsnorm_kernel(x_ref, w_ref, o_ref, *, eps, inv_d):
    # One [block_rows, d_pad] tile.  Row statistics in f32 (lane-axis reduce ->
    # XLU, rsqrt -> EUP); the divisor uses the true feature size so zero-padded
    # lanes do not bias the mean.  Pallas-padded garbage rows in a ragged last
    # tile may transiently produce NaN/Inf, but those rows are never written
    # back to HBM, so it is harmless.
    x = x_ref[...]
    xf = x.astype(jnp.float32)
    ssq = jnp.sum(xf * xf, axis=-1, keepdims=True)
    inv_rms = jax.lax.rsqrt(ssq * inv_d + eps)            # f32 [rows, 1]
    if x.dtype == jnp.bfloat16:
        # bf16-native final scaling (v6e/v7x VPUs run bf16 directly): halves
        # vreg pressure and vld/vst traffic; statistics stay in f32.
        o_ref[...] = (x * inv_rms.astype(x.dtype)) * w_ref[...].astype(x.dtype)
    else:
        o_ref[...] = (xf * inv_rms
                      * w_ref[...].astype(jnp.float32)).astype(o_ref.dtype)


# ------------------------------ tile sizing ----------------------------------

_VMEM_WORK_BUDGET = 40 << 20   # bytes available for pipelined tiles + f32 temps
_VMEM_LIMIT_CAP = 48 << 20     # scoped-VMEM ceiling (safe vs v7x's 64 MiB/TC)


def _choose_block_rows(n_rows, d_pad, itemsize,
                       vmem_budget_bytes=_VMEM_WORK_BUDGET):
    """Largest row tile (multiple of 8, or full extent) within the VMEM budget.

    Per-row VMEM cost: in + out tiles, each double-buffered by the pipeliner
    (4 * d_pad * itemsize), plus ~2 live f32 copies for the upcast / statistics
    working set (8 * d_pad).
    """
    per_row = 4 * d_pad * itemsize + 8 * d_pad
    rows = int(vmem_budget_bytes // max(1, per_row))
    if rows >= n_rows:
        rows = int(n_rows)                       # full extent -> always legal
    else:
        rows = max(8, (rows // 8) * 8)           # sublane-aligned partial tiles

    # Megacore (v7x): keep >= 2 grid steps so both TensorCores get work.
    if rows >= n_rows and n_rows >= 16:
        half = -(-n_rows // 2)                   # ceil(n/2)
        half = -(-half // 8) * 8                 # round up to a multiple of 8
        if half < n_rows:
            rows = half
    return rows


def _vmem_limit(block_rows, d_pad, itemsize):
    need = block_rows * (4 * d_pad * itemsize + 8 * d_pad) + d_pad * itemsize
    return int(min(_VMEM_LIMIT_CAP, max(32 << 20, need + (2 << 20))))


# ------------------------------ wrapper --------------------------------------

def rms_layer_norm(x, weight, *, eps=1e-6, block_rows=None):
    """RMSLayerNorm forward: x * rsqrt(mean(x^2, -1) + eps) * weight."""
    orig_shape = x.shape
    d = int(orig_shape[-1])
    n = int(np.prod(orig_shape[:-1])) if len(orig_shape) > 1 else 1
    x2d = x.reshape(n, d)

    # Lane-dense feature axis: pad D up to a multiple of 128 so VPU ops and
    # output stores are unmasked.  The RMS divisor uses the true D and the
    # padded columns are sliced away, so semantics are unchanged.
    d_pad = max(128, -(-d // 128) * 128)
    if d_pad != d:
        x2d = jnp.pad(x2d, ((0, 0), (0, d_pad - d)))
        w_row = jnp.pad(weight.reshape(1, d), ((0, 0), (0, d_pad - d)))
    else:
        w_row = weight.reshape(1, d)

    itemsize = jnp.dtype(x2d.dtype).itemsize
    if block_rows is None:
        block_rows = _choose_block_rows(n, d_pad, itemsize)
    block_rows = int(min(block_rows, n))
    if block_rows < n:
        block_rows = max(8, (block_rows // 8) * 8)

    grid = (pl.cdiv(n, block_rows),)
    kernel = functools.partial(_rmsnorm_kernel, eps=float(eps), inv_d=1.0 / d)

    out = pl.pallas_call(
        kernel,
        out_shape=jax.ShapeDtypeStruct((n, d_pad), x2d.dtype),
        grid=grid,
        in_specs=[
            pl.BlockSpec((block_rows, d_pad), lambda i: (i, 0)),    # activations
            # Gain row: constant across the grid -> keep it fully resident in
            # VMEM (no double-buffering, no per-step DMA descriptors).
            pl.BlockSpec(memory_space=pltpu.MemorySpace.VMEM),
        ],
        out_specs=pl.BlockSpec((block_rows, d_pad), lambda i: (i, 0)),
        compiler_params=pltpu.CompilerParams(
            dimension_semantics=("parallel",),                      # megacore
            vmem_limit_bytes=_vmem_limit(block_rows, d_pad, itemsize),
        ),
    )(x2d, w_row)

    if d_pad != d:
        out = out[:, :d]
    return out.reshape(orig_shape)


# ------------------------------ reference ------------------------------------

def rms_layer_norm_ref(x, weight, eps=1e-6):
    xf = x.astype(jnp.float32)
    var = jnp.mean(xf * xf, axis=-1, keepdims=True)
    y = xf * jax.lax.rsqrt(var + eps)
    return (y * weight.astype(jnp.float32)).astype(x.dtype)


# --------------------------------- main ---------------------------------------

if __name__ == "__main__":
    key = jax.random.PRNGKey(0)
    k1, k2, k3, k4 = jax.random.split(key, 4)

    # Small shapes consistent with the module: batch=2, seq=8, hidden=32.
    # (D=32 exercises the lane-padding path; n=16 exercises the megacore split.)
    B, S, D = 2, 8, 32
    x = jax.random.normal(k1, (B, S, D), jnp.float32)
    w = 1.0 + 0.1 * jax.random.normal(k2, (D,), jnp.float32)

    out = jax.jit(rms_layer_norm)(x, w)
    jax.block_until_ready(out)
    ref = rms_layer_norm_ref(x, w)
    np.testing.assert_allclose(np.asarray(out), np.asarray(ref),
                               rtol=1e-5, atol=1e-5)
    assert out.shape == (B, S, D)
    assert bool(jnp.all(jnp.isfinite(out)))

    # Ragged multi-block case: exercises the row grid + partial last tile.
    N2, D2 = 201, 256
    x2 = jax.random.normal(k3, (N2, D2), jnp.float32)
    w2 = 1.0 + 0.1 * jax.random.normal(k4, (D2,), jnp.float32)
    out2 = jax.jit(functools.partial(rms_layer_norm, block_rows=64))(x2, w2)
    jax.block_until_ready(out2)
    np.testing.assert_allclose(np.asarray(out2),
                               np.asarray(rms_layer_norm_ref(x2, w2)),
                               rtol=1e-5, atol=1e-5)

    # bf16 activations: f32 statistics, bf16-native final scaling.
    xb = x2.astype(jnp.bfloat16)
    wb = w2.astype(jnp.bfloat16)
    outb = jax.jit(rms_layer_norm)(xb, wb)
    jax.block_until_ready(outb)
    refb = rms_layer_norm_ref(xb, wb)
    np.testing.assert_allclose(np.asarray(outb, dtype=np.float32),
                               np.asarray(refb, dtype=np.float32),
                               rtol=2e-2, atol=2e-2)

    print("KERNEL_OK")
</pallas_src>

<mosaic_0001>
module attributes {stable_mosaic.version = 11 : i64} {
  func.func @_rmsnorm_kernel(%arg0: i32, %arg1: memref<8x128xf32, #tpu.memory_space<vmem>>, %arg2: memref<1x128xf32, #tpu.memory_space<vmem>>, %arg3: memref<8x128xf32, #tpu.memory_space<vmem>>) attributes {dimension_semantics = [#tpu.dimension_semantics<parallel>], iteration_bounds = array<i64: 2>, scalar_prefetch = 0 : i64, scratch_operands = 0 : i64, tpu.core_type = #tpu.core_type<tc>, window_params = [{transform_indices = @transform_0, window_bounds = array<i64: 8, 128>}, {pipeline_mode = #tpu.pipeline_mode<synchronous>, transform_indices = @transform_1, window_bounds = array<i64: 1, 128>}, {transform_indices = @transform_2, window_bounds = array<i64: 8, 128>}]} {
    %c0 = arith.constant 0 : index
    %c0_0 = arith.constant 0 : index
    %0 = vector.load %arg1[%c0, %c0_0] : memref<8x128xf32, #tpu.memory_space<vmem>>, vector<8x128xf32>
    %1 = arith.mulf %0, %0 : vector<8x128xf32>
    %cst = arith.constant dense<0.000000e+00> : vector<8xf32>
    %2 = vector.multi_reduction <add>, %1, %cst [1] : vector<8x128xf32> to vector<8xf32>
    %3 = vector.shape_cast %2 : vector<8xf32> to vector<8x1xf32>
    %cst_1 = arith.constant 3.125000e-02 : f32
    %4 = vector.broadcast %cst_1 : f32 to vector<8x1xf32>
    %5 = arith.mulf %3, %4 : vector<8x1xf32>
    %cst_2 = arith.constant 9.99999997E-7 : f32
    %6 = vector.broadcast %cst_2 : f32 to vector<8x1xf32>
    %7 = arith.addf %5, %6 : vector<8x1xf32>
    %8 = math.rsqrt %7 : vector<8x1xf32>
    %9 = vector.broadcast %8 : vector<8x1xf32> to vector<8x128xf32>
    %10 = arith.mulf %0, %9 : vector<8x128xf32>
    %c0_3 = arith.constant 0 : index
    %c0_4 = arith.constant 0 : index
    %11 = vector.load %arg2[%c0_3, %c0_4] : memref<1x128xf32, #tpu.memory_space<vmem>>, vector<1x128xf32>
    %12 = vector.broadcast %11 : vector<1x128xf32> to vector<8x128xf32>
    %13 = arith.mulf %10, %12 : vector<8x128xf32>
    %c0_5 = arith.constant 0 : index
    %c0_6 = arith.constant 0 : index
    %14 = vector.load %arg3[%c0_5, %c0_6] : memref<8x128xf32, #tpu.memory_space<vmem>>, vector<8x128xf32>
    tpu.vector_store %arg3[%c0_5, %c0_6], %13 {strides = array<i32>} : memref<8x128xf32, #tpu.memory_space<vmem>>, vector<8x128xf32>,
    return
  }
  func.func @transform_0(%arg0: i32) -> (i32, i32) {
    %c0_i32 = arith.constant 0 : i32
    %c0_i32_0 = arith.constant 0 : i32
    return %arg0, %c0_i32 : i32, i32
  }
  func.func @transform_1(%arg0: i32) -> (i32, i32) {
    %c0_i32 = arith.constant 0 : i32
    %c0_i32_0 = arith.constant 0 : i32
    %c0_i32_1 = arith.constant 0 : i32
    return %c0_i32, %c0_i32_0 : i32, i32
  }
  func.func @transform_2(%arg0: i32) -> (i32, i32) {
    %c0_i32 = arith.constant 0 : i32
    %c0_i32_0 = arith.constant 0 : i32
    return %arg0, %c0_i32 : i32, i32
  }
}

</mosaic_0001>

<llo_original>
// kernel: rms_layer_norm.1
$region0: #{rms_layer_norm.1}
  #allocation0 [shape = 'u32[]', space=smem, size = 0x4, offset = 0x4, fixed_abs, tag = 'smem constant byte address 0x4 - core index']
  #allocation1 [shape = 'u32[144,128]{1,0:T(1,128)}', space=vmem, size = 0x12000, scoped, tag = 'internal scratch']
  %s0 = inlined_call_operand.vmem [shape: f32[16,128], index: 0, kind: input, shape index: {}]
  %s1 = inlined_call_operand.vmem [shape: f32[1,128], index: 1, kind: input, shape index: {}]
  %s2 = inlined_call_operand.vmem [shape: f32[16,128], index: 2, kind: output, shape index: {}]
  %s3 = sld [smem:[#allocation0]]
  $region41: #{rms_layer_norm.1} parent=0
    _
  %s5 = ssub.s32 1, %s3
  %s6 = scalar_select 0, %s5, %s3
  loop: start=0, step=1, limit=4
  $region2: #{rms_layer_norm.1} parent=0 // loop_pre_header
    _
  $region3: #{rms_layer_norm.1} parent=0 // loop_header
    %s8 = sphi 0, %s12
    %p9 = scmp.ge.s32.totalorder %s8, 4
    %s18 = sphi 0, %s20
    %s21 = sphi 0, %s18
    %s22 = sphi 0, %s21
    %s38 = sphi 0, %s22
    %s42 = sphi 0, %s42
    %s44 = sphi 0, %s42
    %s45 = sphi 0, %s44
    %s59 = sphi 0, %s45
    %s65 = sphi 0, %s67
    %s68 = sphi 0, %s65
    %s69 = sphi 0, %s68
    %s85 = sphi 0, %s69
  $region4: #{rms_layer_norm.1} parent=0 // loop_header_branch
    %11 = sbr.rel (%p9) target = $region8
  $region5: #{rms_layer_norm.1} parent=0 // loop_body
    %s13 = ssub.s32 %s8, 1
    %s14 = ssub.s32 %s8, 2
    %s15 = sadd.s32 %s8, 1
    %s16 = ssub.s32 %s8, %s15
    %p17 = scmp.eq.s32.totalorder %s16, 0
    %s19 = sadd.s32 %s18, 1
    %s20 = scalar_select %p17, %s18, %s19
    %p23 = pneg %p17
    %p24 = scmp.eq.s32.totalorder %s8, 1
    %p25 = por %p23, %p24
    %p26 = scmp.ne.s32.totalorder %s18, %s21
    %p27 = scmp.eq.s32.totalorder %s8, 0
    %p28 = por %p26, %p27
    %p29 = scmp.ne.s32.totalorder %s18, %s21
    %p30 = scmp.eq.s32.totalorder %s13, 1
    %p31 = por %p29, %p30
    %p32 = scmp.ne.s32.totalorder %s21, %s22
    %p33 = scmp.eq.s32.totalorder %s13, 0
    %p34 = por %p32, %p33
    %p35 = scmp.ne.s32.totalorder %s21, %s22
    %p36 = scmp.eq.s32.totalorder %s14, 1
    %p37 = por %p35, %p36
    %p39 = scmp.ne.s32.totalorder %s22, %s38
    %p40 = scmp.eq.s32.totalorder %s14, 0
    %p41 = por %p39, %p40
    %s43 = sadd.s32 %s42, 1
    %p46 = scmp.eq.s32.totalorder %s8, 1
    %p47 = scmp.ne.s32.totalorder %s42, %s44
    %p48 = scmp.eq.s32.totalorder %s8, 0
    %p49 = por %p47, %p48
    %p50 = scmp.ne.s32.totalorder %s42, %s44
    %p51 = scmp.eq.s32.totalorder %s13, 1
    %p52 = por %p50, %p51
    %p53 = scmp.ne.s32.totalorder %s44, %s45
    %p54 = scmp.eq.s32.totalorder %s13, 0
    %p55 = por %p53, %p54
    %p56 = scmp.ne.s32.totalorder %s44, %s45
    %p57 = scmp.eq.s32.totalorder %s14, 1
    %p58 = por %p56, %p57
    %p60 = scmp.ne.s32.totalorder %s45, %s59
    %p61 = scmp.eq.s32.totalorder %s14, 0
    %p62 = por %p60, %p61
    %s63 = ssub.s32 %s8, %s15
    %p64 = scmp.eq.s32.totalorder %s63, 0
    %s66 = sadd.s32 %s65, 1
    %s67 = scalar_select %p64, %s65, %s66
    %p70 = pneg %p64
    %p71 = scmp.eq.s32.totalorder %s8, 1
    %p72 = por %p70, %p71
    %p73 = scmp.ne.s32.totalorder %s65, %s68
    %p74 = scmp.eq.s32.totalorder %s8, 0
    %p75 = por %p73, %p74
    %p76 = scmp.ne.s32.totalorder %s65, %s68
    %p77 = scmp.eq.s32.totalorder %s13, 1
    %p78 = por %p76, %p77
    %p79 = scmp.ne.s32.totalorder %s68, %s69
    %p80 = scmp.eq.s32.totalorder %s13, 0
    %p81 = por %p79, %p80
    %p82 = scmp.ne.s32.totalorder %s68, %s69
    %p83 = scmp.eq.s32.totalorder %s14, 1
    %p84 = por %p82, %p83
    %p86 = scmp.ne.s32.totalorder %s69, %s85
    %p87 = scmp.eq.s32.totalorder %s14, 0
    %p88 = por %p86, %p87
    %p89 = scmp.le.s32.totalorder 1, %s8
    %p90 = scmp.lt.s32.totalorder %s8, 3
    %p91 = pnand %p89, %p90
    %p92 = pneg %p91
    // Predicated region
    $region9: #{rms_layer_norm.1} parent=5 // pred_check
      _
    $region10: #{rms_layer_norm.1} parent=5 // pred_check_branch
      %94 = sbr.rel (%p91) target = $region12
    $region11: #{rms_layer_norm.1} parent=5 // pred_region
      %s95 = ssub.s32 %s8, 1
      // Predicated region
      $region13: #{rms_layer_norm.1} parent=11 // pred_check
        %p96 = pneg %p55
      $region14: #{rms_layer_norm.1} parent=11 // pred_check_branch
        %98 = sbr.rel (%p96) target = $region16
      $region15: #{rms_layer_norm.1} parent=11 // pred_region
        _
      $region16: #{rms_layer_norm.1} parent=11 // pred_fallthru
        _
    $region12: #{rms_layer_norm.1} parent=5 // pred_fallthru
      _
    %p99 = scmp.lt.s32.totalorder %s8, 2
    // Predicated region
    $region17: #{rms_layer_norm.1} parent=5 // pred_check
      %p100 = pneg %p99
    $region18: #{rms_layer_norm.1} parent=5 // pred_check_branch
      %102 = sbr.rel (%p100) target = $region20
    $region19: #{rms_layer_norm.1} parent=5 // pred_region
      // Predicated region
      $region21: #{rms_layer_norm.1} parent=19 // pred_check
        %p103 = pneg %p28
      $region22: #{rms_layer_norm.1} parent=19 // pred_check_branch
        %105 = sbr.rel (%p103) target = $region24
      $region23: #{rms_layer_norm.1} parent=19 // pred_region
        %p106 = scmp.lt.s32.totalorder %s8, 1
        %s107 = scalar_select %p106, %s8, 1
        %s108 = smul.addr %s107, 8
        %s109 = scalar_lea.vmem %s0, %s108
      $region24: #{rms_layer_norm.1} parent=19 // pred_fallthru
        _
    $region20: #{rms_layer_norm.1} parent=5 // pred_fallthru
      _
    %p110 = scmp.le.s32.totalorder 1, %s8
    %p111 = scmp.lt.s32.totalorder %s8, 3
    %p112 = pnand %p110, %p111
    %p113 = pneg %p112
    // Predicated region
    $region25: #{rms_layer_norm.1} parent=5 // pred_check
      _
    $region26: #{rms_layer_norm.1} parent=5 // pred_check_branch
      %115 = sbr.rel (%p112) target = $region28
    $region27: #{rms_layer_norm.1} parent=5 // pred_region
      %s116 = ssub.s32 %s8, 1
      %p117 = scmp.lt.s32.totalorder %s13, 1
      %s118 = scalar_select %p117, %s13, 1
      %s119 = smul.addr %s118, 8
      %s120 = scalar_lea.vmem %s0, %s119
      %p121 = pneg %p34
      %p122 = pneg %p31
      %p123 = pneg %p55
      %p124 = pneg %p52
      %p125 = pneg %p81
      %p126 = pneg %p78
      %p127 = scmp.lt.s32.totalorder %s13, 1
      %s128 = scalar_select %p127, %s13, 1
      %s129 = smul.addr %s128, 8
      %s130 = scalar_lea.vmem %s2, %s129
      %p131 = scmp.lt.s32.totalorder %s13, 1
      %s132 = scalar_select %p131, %s13, 1
      %s133 = smul.addr %s132, 8
      %s134 = scalar_lea.vmem %s0, %s133
      %p135 = scmp.lt.s32.totalorder %s13, 1
      %s136 = scalar_select %p135, %s13, 1
      %s137 = smul.addr %s136, 8
      %s138 = scalar_lea.vmem %s2, %s137
      %v139 = vld [vmem:[%s134] sm:$0xff]
      %v140 = vmul.f32 %v139, %v139
      %141 = vadd.xlane.f32.xlu0 %v140
      %v142 = vpop.xlane.xlu0 %141
      %v143 = vmul.f32 %v142, 0.03125
      %v144 = vadd.f32 %v143, 1e-06
      %v145 = vrsqrt.pop %v144
      %v146 = vmul.f32 %v139, %v145
      %v147 = vld [vmem:[%s1] sm:$0x1]
      %v149 = vlaneseq
      %v150 = vshrl.u32 %v149, 7
      %v151 = vsub.s32 0, %v150
      %v152 = vrot.slane %v147, %v151
      %v154 = vmul.f32 %v146, %v152
      %155 = vst [vmem:[%s138] sm:$0xff] %v154
      %p156 = scmp.lt.s32.totalorder %s13, 1
      %s157 = scalar_select %p156, %s13, 1
      %s158 = smul.addr %s157, 8
      %s159 = scalar_lea.vmem %s2, %s158
      // Predicated region
      $region29: #{rms_layer_norm.1} parent=27 // pred_check
        %p160 = pneg %p78
      $region30: #{rms_layer_norm.1} parent=27 // pred_check_branch
        %162 = sbr.rel (%p160) target = $region32
      $region31: #{rms_layer_norm.1} parent=27 // pred_region
        _
      $region32: #{rms_layer_norm.1} parent=27 // pred_fallthru
        _
    $region28: #{rms_layer_norm.1} parent=5 // pred_fallthru
      _
    %p163 = scmp.le.s32.totalorder 2, %s8
    // Predicated region
    $region33: #{rms_layer_norm.1} parent=5 // pred_check
      %p164 = pneg %p163
    $region34: #{rms_layer_norm.1} parent=5 // pred_check_branch
      %166 = sbr.rel (%p164) target = $region36
    $region35: #{rms_layer_norm.1} parent=5 // pred_region
      %s167 = ssub.s32 %s8, 2
      // Predicated region
      $region37: #{rms_layer_norm.1} parent=35 // pred_check
        %p168 = pneg %p84
      $region38: #{rms_layer_norm.1} parent=35 // pred_check_branch
        %170 = sbr.rel (%p168) target = $region40
      $region39: #{rms_layer_norm.1} parent=35 // pred_region
        %p171 = scmp.lt.s32.totalorder %s14, 1
        %s172 = scalar_select %p171, %s14, 1
        %s173 = smul.addr %s172, 8
        %s174 = scalar_lea.vmem %s2, %s173
      $region40: #{rms_layer_norm.1} parent=35 // pred_fallthru
        _
    $region36: #{rms_layer_norm.1} parent=5 // pred_fallthru
      _
  $region6: #{rms_layer_norm.1} parent=0 // loop_footer
    %s12 = sadd.s32 1, %s8
  $region7: #{rms_layer_norm.1} parent=0 // loop_footer_branch
    %7 = sbr.rel target = $region3
  $region8: #{rms_layer_norm.1} parent=0 // loop_exit
    _

</llo_original>
